<compile_context>
chip_gen: v6e
topology: v6e:2x2x1
jax: 0.10.0
libtpu: 0.0.40
codegen_flags: <defaults>
</compile_context>

<pallas_src>
import jax
import jax.numpy as jnp
from jax.experimental import pallas as pl
from jax.experimental.pallas import tpu as pltpu

EPS = 1e-3
LEAKY_SLOPE = 0.05

# Conservative per-TensorCore VMEM residency targets. v7x has 64 MiB per TC and,
# under a "parallel" batch axis, each TC holds its own copy of the weights.
_VMEM_BUDGET = 48 * 1024 * 1024
_WEIGHT_BUDGET = 36 * 1024 * 1024


# --------------------------------------------------------------------------- #
# Kernels
# --------------------------------------------------------------------------- #
def _rb_kernel(x_ref, w1_ref, b1_ref, w2_ref, b2_ref, o_ref):
    """No context. x_ref doubles as matmul input and residual (one DMA)."""
    x = x_ref[...]
    h = jnp.dot(x.astype(w1_ref.dtype), w1_ref[...],
                preferred_element_type=jnp.float32) + b1_ref[...]
    h = jnp.maximum(h, LEAKY_SLOPE * h)               # LeakyReLU(0.05)
    # Dropout(p=0.3): identity in eval mode.
    h = jnp.dot(h.astype(w2_ref.dtype), w2_ref[...],
                preferred_element_type=jnp.float32) + b2_ref[...]
    h = jnp.maximum(h, LEAKY_SLOPE * h)
    o_ref[...] = (h + x.astype(jnp.float32)).astype(o_ref.dtype)


def _rb_ctx1_kernel(x_ref, c_ref, w1x_ref, w1c_ref, b1_ref, w2_ref, b2_ref,
                    o_ref):
    """C == 1 context: rank-1 VPU update instead of a zero-padded MXU pass."""
    x = x_ref[...]
    h = jnp.dot(x.astype(w1x_ref.dtype), w1x_ref[...],
                preferred_element_type=jnp.float32)
    # (TB,1) * (1,Fp) broadcast — a handful of VPU ops hidden under MXU slack.
    h = h + c_ref[...] * w1c_ref[...]
    h = h + b1_ref[...]
    h = jnp.maximum(h, LEAKY_SLOPE * h)
    # Dropout(p=0.3): identity in eval mode.
    h = jnp.dot(h.astype(w2_ref.dtype), w2_ref[...],
                preferred_element_type=jnp.float32) + b2_ref[...]
    h = jnp.maximum(h, LEAKY_SLOPE * h)
    o_ref[...] = (h + x.astype(jnp.float32)).astype(o_ref.dtype)


def _rb_nt_kernel(xw_ref, xr_ref, w1_ref, b1_ref, w2_ref, b2_ref, o_ref, h_ref):
    """W2 N-tiled variant: h computed once per batch tile (j == 0) into VMEM."""
    @pl.when(pl.program_id(1) == 0)
    def _():
        x = xw_ref[...]
        h = jnp.dot(x.astype(w1_ref.dtype), w1_ref[...],
                    preferred_element_type=jnp.float32) + b1_ref[...]
        h_ref[...] = jnp.maximum(h, LEAKY_SLOPE * h)
    h2 = jnp.dot(h_ref[...].astype(w2_ref.dtype), w2_ref[...],
                 preferred_element_type=jnp.float32) + b2_ref[...]
    h2 = jnp.maximum(h2, LEAKY_SLOPE * h2)
    o_ref[...] = (h2 + xr_ref[...].astype(jnp.float32)).astype(o_ref.dtype)


def _rb_ctx1_nt_kernel(xw_ref, xr_ref, c_ref, w1x_ref, w1c_ref, b1_ref,
                       w2_ref, b2_ref, o_ref, h_ref):
    """W2 N-tiled + C == 1 context (rank-1 update at j == 0)."""
    @pl.when(pl.program_id(1) == 0)
    def _():
        x = xw_ref[...]
        h = jnp.dot(x.astype(w1x_ref.dtype), w1x_ref[...],
                    preferred_element_type=jnp.float32)
        h = h + c_ref[...] * w1c_ref[...]
        h = h + b1_ref[...]
        h_ref[...] = jnp.maximum(h, LEAKY_SLOPE * h)
    h2 = jnp.dot(h_ref[...].astype(w2_ref.dtype), w2_ref[...],
                 preferred_element_type=jnp.float32) + b2_ref[...]
    h2 = jnp.maximum(h2, LEAKY_SLOPE * h2)
    o_ref[...] = (h2 + xr_ref[...].astype(jnp.float32)).astype(o_ref.dtype)


# --------------------------------------------------------------------------- #
# Helpers
# --------------------------------------------------------------------------- #
def _round_up(n, m):
    return ((n + m - 1) // m) * m


def _pad2(a, rows, cols):
    r, c = a.shape
    if r == rows and c == cols:
        return a
    return jnp.pad(a, ((0, rows - r), (0, cols - c)))


def _fold_bn(w, b, gamma, beta, mean, var):
    """Fold BatchNorm1d (eval, running stats, eps=1e-3) + bias into the linear.

    w is PyTorch-layout (out, in). Returns (in, out) weight and (out,) bias so
    that  x @ w_f + b_f  ==  BN(x @ w.T + b).
    """
    scale = gamma * jax.lax.rsqrt(var + EPS)          # (out,)
    w_f = (w * scale[:, None]).T                      # (in, out)
    b_f = (b - mean) * scale + beta                   # (out,)
    return w_f, b_f


def _divisor_tiles(fp):
    """Multiples of 128 that evenly divide fp, descending (fp first, 128 last)."""
    return [d for d in range(fp, 127, -128) if fp % d == 0]


def _pick_tn(fp, requested):
    tn = max(128, min(int(requested), fp))
    tn = (tn // 128) * 128
    while fp % tn != 0:
        tn -= 128
    return tn


def _is_megacore():
    """Best-effort: v7x has 2 TensorCores; prefer an even batch-step count."""
    try:
        kind = jax.devices()[0].device_kind.lower()
    except Exception:
        return False
    return "v7" in kind


_SB_OK = None  # cached: does pipeline_mode=pl.Buffered(1) lower on this backend?


def _probe_single_buffered():
    """One-time feature detection for single-buffered (Buffered(1)) params.

    Runs a tiny pallas_call under ensure_compile_time_eval so it also works if
    residual_block is being traced under jax.jit; result is cached.
    """
    global _SB_OK
    if _SB_OK is not None:
        return _SB_OK
    if not hasattr(pl, "Buffered"):
        _SB_OK = False
        return _SB_OK
    try:
        def _probe_kernel(p_ref, x_ref, o_ref):
            o_ref[...] = x_ref[...] + p_ref[...]

        with jax.ensure_compile_time_eval():
            p = jnp.zeros((8, 128), jnp.float32)
            xx = jnp.zeros((16, 128), jnp.float32)
            out = pl.pallas_call(
                _probe_kernel,
                out_shape=jax.ShapeDtypeStruct((16, 128), jnp.float32),
                grid=(2,),
                in_specs=[pl.BlockSpec((8, 128), lambda i: (0, 0),
                                       pipeline_mode=pl.Buffered(1)),
                          pl.BlockSpec((8, 128), lambda i: (i, 0))],
                out_specs=pl.BlockSpec((8, 128), lambda i: (i, 0)),
            )(p, xx)
            jax.block_until_ready(out)
        _SB_OK = True
    except Exception:
        _SB_OK = False
    return _SB_OK


# --------------------------------------------------------------------------- #
# Wrapper
# --------------------------------------------------------------------------- #
def residual_block(x, params, context=None, *, batch_tile=None,
                   weight_dtype=jnp.bfloat16, w2_block_n=None):
    """Pallas implementation of ResidualBlock.forward (eval-mode semantics).

    x:        (B, F) float32
    context:  optional (B, 1) float32 (the PyTorch module adds one feature)
    params:   dict with w1 (F, F+C), b1 (F,), bn1_{gamma,beta,mean,var} (F,),
              w2 (F, F), b2 (F,), bn2_{gamma,beta,mean,var} (F,)
              (linear weights stored PyTorch-style as (out, in)).
    weight_dtype: bf16 by default (native MXU rate on v5e/v6e/v7x, half the
              weight VMEM/HBM traffic; f32 accumulation). Pass jnp.float32 for
              bit-exact eval numerics, or None to follow x.dtype.
    w2_block_n:   force W2's output-feature tile (auto: full unless the weights
              would blow the per-TensorCore VMEM budget).
    """
    B, F = x.shape
    Fp = _round_up(max(F, 128), 128)                  # lane-dense feature dim
    wdt = x.dtype if weight_dtype is None else weight_dtype
    ws = jnp.dtype(wdt).itemsize

    # Fold BN (eval, running stats) + linear bias into the linears (runs once).
    w1f, b1f = _fold_bn(params["w1"], params["b1"], params["bn1_gamma"],
                        params["bn1_beta"], params["bn1_mean"], params["bn1_var"])
    w2f, b2f = _fold_bn(params["w2"], params["b2"], params["bn2_gamma"],
                        params["bn2_beta"], params["bn2_mean"], params["bn2_var"])

    # Single-buffer constant-index parameter blocks if supported (halves their
    # VMEM footprint). Decided once via a cached probe — jit-safe.
    sb = _probe_single_buffered()
    wbuf = 1 if sb else 2

    # ---- W2 output-feature (N) tiling so large F still fits per-TC VMEM. ----
    if w2_block_n is not None:
        TN = _pick_tn(Fp, w2_block_n)
    else:
        TN = Fp
        if 2 * Fp * Fp * ws * wbuf > _WEIGHT_BUDGET:
            for d in _divisor_tiles(Fp):
                # Tiled W2 blocks change index with j -> always double-buffered.
                if Fp * Fp * ws * wbuf + Fp * d * ws * 2 <= _WEIGHT_BUDGET:
                    TN = d
                    break
            else:
                TN = 128
            # TODO(synk): if W1 alone exceeds the budget (very large F), tile
            # W1's N with a third grid axis into the same h scratch.
    n_tiled = TN < Fp

    weight_resident = Fp * Fp * ws * wbuf + (
        Fp * TN * ws * 2 if n_tiled else Fp * Fp * ws * wbuf)

    # ---- Batch tile: VMEM-capped. One big tile on single-TC chips; an even
    # number of steps on v7x so both TensorCores stay busy. ----
    per_row = 4 * (3 * Fp + 5 * TN) if n_tiled else 4 * 6 * Fp   # bytes / row est.
    remaining = max(_VMEM_BUDGET - weight_resident, 2 * 1024 * 1024)
    tb_cap = max(8, (remaining // per_row) // 8 * 8)
    if batch_tile is not None:
        TB = _round_up(batch_tile, 8)
    elif _is_megacore() and B > 8:
        steps = 2
        TB = _round_up(-(-B // steps), 8)
        while TB > tb_cap and TB > 8:
            steps += 2
            TB = _round_up(-(-B // steps), 8)
    else:
        TB = min(_round_up(B, 8), tb_cap)
    TB = max(TB, 8)
    Bp = _round_up(B, TB)
    nb = Bp // TB

    # Explicit scoped-VMEM limit from the actual residency (the defaults —
    # ~16 MiB on v5e, ~32 MiB on v6e/v7x — are far below physical).
    est = weight_resident + TB * per_row + 64 * Fp
    vmem_limit = int(min(max(est * 1.3, 32 * 1024 * 1024), 60 * 1024 * 1024))

    # Advisory cost estimate so XLA schedules surrounding ops around the call.
    flops = 4 * Bp * Fp * Fp + (2 * Bp * Fp if context is not None else 0)
    bytes_accessed = 2 * Fp * Fp * ws + 2 * Bp * Fp * 4 + 4 * Fp * 4
    try:
        cost = pl.CostEstimate(flops=flops, transcendentals=0,
                               bytes_accessed=int(bytes_accessed))
    except Exception:
        cost = None

    # ---- Pad to lane-dense shapes and build the call. ----
    x_p = _pad2(x, Bp, Fp)
    b1_p = _pad2(b1f.reshape(1, F), 1, Fp)
    b2_p = _pad2(b2f.reshape(1, F), 1, Fp)
    w2_p = _pad2(w2f, Fp, Fp).astype(wdt)

    def pspec(shape, imap):
        # Constant-index parameter blocks: single-buffer when supported.
        if sb:
            return pl.BlockSpec(shape, imap, pipeline_mode=pl.Buffered(1))
        return pl.BlockSpec(shape, imap)

    if context is None:
        w1_p = _pad2(w1f, Fp, Fp).astype(wdt)
        if not n_tiled:
            kernel = _rb_kernel
            args = (x_p, w1_p, b1_p, w2_p, b2_p)
            in_specs = [pl.BlockSpec((TB, Fp), lambda i: (i, 0)),
                        pspec((Fp, Fp), lambda i: (0, 0)),
                        pspec((1, Fp), lambda i: (0, 0)),
                        pspec((Fp, Fp), lambda i: (0, 0)),
                        pspec((1, Fp), lambda i: (0, 0))]
        else:
            kernel = _rb_nt_kernel
            # x is passed twice: full rows for the W1 matmul (constant over j),
            # and an (i, j) slice for the residual (pure BlockSpec indexing,
            # no in-kernel dynamic lane slicing needed).
            args = (x_p, x_p, w1_p, b1_p, w2_p, b2_p)
            in_specs = [pl.BlockSpec((TB, Fp), lambda i, j: (i, 0)),
                        pl.BlockSpec((TB, TN), lambda i, j: (i, j)),
                        pspec((Fp, Fp), lambda i, j: (0, 0)),
                        pspec((1, Fp), lambda i, j: (0, 0)),
                        pl.BlockSpec((Fp, TN), lambda i, j: (0, j)),
                        pl.BlockSpec((1, TN), lambda i, j: (0, j))]
    else:
        C = context.shape[1]
        if C != 1:
            # TODO(synk): general C > 1 context (never produced by the PyTorch
            # module, which uses int(context) == 1) would need a matmul path.
            raise NotImplementedError("context must have exactly one feature")
        c_p = _pad2(context.astype(x.dtype), Bp, 1)            # (Bp, 1), no lane pad
        w1x_p = _pad2(w1f[:F], Fp, Fp).astype(wdt)             # x part of W1
        w1c_p = _pad2(w1f[F:], 1, Fp)                          # (1, Fp), f32 rank-1 row
        if not n_tiled:
            kernel = _rb_ctx1_kernel
            args = (x_p, c_p, w1x_p, w1c_p, b1_p, w2_p, b2_p)
            in_specs = [pl.BlockSpec((TB, Fp), lambda i: (i, 0)),
                        pl.BlockSpec((TB, 1), lambda i: (i, 0)),
                        pspec((Fp, Fp), lambda i: (0, 0)),
                        pspec((1, Fp), lambda i: (0, 0)),
                        pspec((1, Fp), lambda i: (0, 0)),
                        pspec((Fp, Fp), lambda i: (0, 0)),
                        pspec((1, Fp), lambda i: (0, 0))]
        else:
            kernel = _rb_ctx1_nt_kernel
            args = (x_p, x_p, c_p, w1x_p, w1c_p, b1_p, w2_p, b2_p)
            in_specs = [pl.BlockSpec((TB, Fp), lambda i, j: (i, 0)),
                        pl.BlockSpec((TB, TN), lambda i, j: (i, j)),
                        pl.BlockSpec((TB, 1), lambda i, j: (i, 0)),
                        pspec((Fp, Fp), lambda i, j: (0, 0)),
                        pspec((1, Fp), lambda i, j: (0, 0)),
                        pspec((1, Fp), lambda i, j: (0, 0)),
                        pl.BlockSpec((Fp, TN), lambda i, j: (0, j)),
                        pl.BlockSpec((1, TN), lambda i, j: (0, j))]

    if not n_tiled:
        grid = (nb,)
        out_specs = pl.BlockSpec((TB, Fp), lambda i: (i, 0))
        scratch = []
        dims = ("parallel",)
    else:
        grid = (nb, Fp // TN)
        out_specs = pl.BlockSpec((TB, TN), lambda i, j: (i, j))
        scratch = [pltpu.VMEM((TB, Fp), jnp.float32)]
        dims = ("parallel", "arbitrary")

    out_p = pl.pallas_call(
        kernel,
        out_shape=jax.ShapeDtypeStruct((Bp, Fp), x.dtype),
        grid_spec=pltpu.PrefetchScalarGridSpec(
            num_scalar_prefetch=0, grid=grid,
            in_specs=in_specs, out_specs=out_specs,
            scratch_shapes=scratch),
        compiler_params=pltpu.CompilerParams(
            dimension_semantics=dims,
            vmem_limit_bytes=vmem_limit),
        cost_estimate=cost,
    )(*args)
    return out_p[:B, :F]


# --------------------------------------------------------------------------- #
# Synthetic params / reference / self-test
# --------------------------------------------------------------------------- #
def init_params(key, features, context=False):
    """Deterministic synthetic init (shapes match the PyTorch module)."""
    fin = features + int(context)
    ks = jax.random.split(key, 8)
    bound1 = 1.0 / jnp.sqrt(fin)
    bound2 = 1.0 / jnp.sqrt(features)
    return {
        "w1": jax.random.uniform(ks[0], (features, fin), jnp.float32, -bound1, bound1),
        "b1": jax.random.uniform(ks[1], (features,), jnp.float32, -bound1, bound1),
        "bn1_gamma": jnp.ones((features,), jnp.float32),
        "bn1_beta": jnp.zeros((features,), jnp.float32),
        "bn1_mean": 0.1 * jax.random.normal(ks[2], (features,), jnp.float32),
        "bn1_var": 1.0 + 0.1 * jax.random.uniform(ks[3], (features,), jnp.float32),
        "w2": jax.random.uniform(ks[4], (features, features), jnp.float32, -bound2, bound2),
        "b2": jax.random.uniform(ks[5], (features,), jnp.float32, -bound2, bound2),
        "bn2_gamma": jnp.ones((features,), jnp.float32),
        "bn2_beta": jnp.zeros((features,), jnp.float32),
        "bn2_mean": 0.1 * jax.random.normal(ks[6], (features,), jnp.float32),
        "bn2_var": 1.0 + 0.1 * jax.random.uniform(ks[7], (features,), jnp.float32),
    }


def _reference(x, params, context=None):
    """Plain-JAX reference (unfolded math) for sanity checking."""
    x_in = x if context is None else jnp.concatenate([x, context], axis=1)
    h = x_in @ params["w1"].T + params["b1"]
    h = (h - params["bn1_mean"]) / jnp.sqrt(params["bn1_var"] + EPS) \
        * params["bn1_gamma"] + params["bn1_beta"]
    h = jnp.where(h >= 0, h, LEAKY_SLOPE * h)
    h = h @ params["w2"].T + params["b2"]
    h = (h - params["bn2_mean"]) / jnp.sqrt(params["bn2_var"] + EPS) \
        * params["bn2_gamma"] + params["bn2_beta"]
    h = jnp.where(h >= 0, h, LEAKY_SLOPE * h)
    return h + x


if __name__ == "__main__":
    key = jax.random.PRNGKey(0)
    kx, kc, kp1, kp2, kp3 = jax.random.split(key, 5)

    batch, features = 32, 32
    x = jax.random.normal(kx, (batch, features), jnp.float32)
    ctx = jax.random.normal(kc, (batch, 1), jnp.float32)

    # Case 1: no context, f32 weights (tight check of the kernel math).
    params = init_params(kp1, features, context=False)
    out = jax.block_until_ready(residual_block(x, params, weight_dtype=jnp.float32))
    ref = _reference(x, params)
    assert out.shape == (batch, features)
    assert jnp.allclose(out, ref, atol=1e-4, rtol=1e-4), \
        f"case1 max abs err {jnp.max(jnp.abs(out - ref))}"

    # Case 2: C == 1 context (rank-1 VPU path), f32 weights.
    params_c = init_params(kp2, features, context=True)
    out_c = jax.block_until_ready(
        residual_block(x, params_c, context=ctx, weight_dtype=jnp.float32))
    ref_c = _reference(x, params_c, context=ctx)
    assert out_c.shape == (batch, features)
    assert jnp.allclose(out_c, ref_c, atol=1e-4, rtol=1e-4), \
        f"case2 max abs err {jnp.max(jnp.abs(out_c - ref_c))}"

    # Case 3: default bf16 weights (MXU-rate path) + multi-step batch grid.
    out_bf = jax.block_until_ready(residual_block(x, params, batch_tile=16))
    assert jnp.allclose(out_bf, ref, atol=8e-2, rtol=8e-2), \
        f"case3 max abs err {jnp.max(jnp.abs(out_bf - ref))}"

    # Cases 4/5: force the W2 N-tiled path (large-F structure) at a small size.
    b2s, f2s = 16, 256
    x2 = jax.random.normal(kx, (b2s, f2s), jnp.float32)
    ctx2 = jax.random.normal(kc, (b2s, 1), jnp.float32)

    params2 = init_params(kp3, f2s, context=False)
    out2 = jax.block_until_ready(
        residual_block(x2, params2, weight_dtype=jnp.float32, w2_block_n=128))
    ref2 = _reference(x2, params2)
    assert jnp.allclose(out2, ref2, atol=5e-4, rtol=5e-4), \
        f"case4 max abs err {jnp.max(jnp.abs(out2 - ref2))}"

    params2c = init_params(kp3, f2s, context=True)
    out2c = jax.block_until_ready(
        residual_block(x2, params2c, context=ctx2, weight_dtype=jnp.float32,
                       w2_block_n=128))
    ref2c = _reference(x2, params2c, context=ctx2)
    assert jnp.allclose(out2c, ref2c, atol=5e-4, rtol=5e-4), \
        f"case5 max abs err {jnp.max(jnp.abs(out2c - ref2c))}"

    print("KERNEL_OK")
</pallas_src>

<mosaic_0001>
module attributes {stable_mosaic.version = 11 : i64} {
  func.func @_probe_kernel(%arg0: i32, %arg1: memref<8x128xf32, #tpu.memory_space<vmem>>, %arg2: memref<8x128xf32, #tpu.memory_space<vmem>>, %arg3: memref<8x128xf32, #tpu.memory_space<vmem>>) attributes {dimension_semantics = [#tpu.dimension_semantics<arbitrary>], iteration_bounds = array<i64: 2>, scalar_prefetch = 0 : i64, scratch_operands = 0 : i64, tpu.core_type = #tpu.core_type<tc>, window_params = [{pipeline_mode = #tpu.pipeline_mode<synchronous>, transform_indices = @transform_0, window_bounds = array<i64: 8, 128>}, {transform_indices = @transform_1, window_bounds = array<i64: 8, 128>}, {transform_indices = @transform_2, window_bounds = array<i64: 8, 128>}]} {
    %c0 = arith.constant 0 : index
    %c0_0 = arith.constant 0 : index
    %0 = vector.load %arg2[%c0, %c0_0] : memref<8x128xf32, #tpu.memory_space<vmem>>, vector<8x128xf32>
    %c0_1 = arith.constant 0 : index
    %c0_2 = arith.constant 0 : index
    %1 = vector.load %arg1[%c0_1, %c0_2] : memref<8x128xf32, #tpu.memory_space<vmem>>, vector<8x128xf32>
    %2 = arith.addf %0, %1 : vector<8x128xf32>
    %c0_3 = arith.constant 0 : index
    %c0_4 = arith.constant 0 : index
    %3 = vector.load %arg3[%c0_3, %c0_4] : memref<8x128xf32, #tpu.memory_space<vmem>>, vector<8x128xf32>
    tpu.vector_store %arg3[%c0_3, %c0_4], %2 {strides = array<i32>} : memref<8x128xf32, #tpu.memory_space<vmem>>, vector<8x128xf32>,
    return
  }
  func.func @transform_0(%arg0: i32) -> (i32, i32) {
    %c0_i32 = arith.constant 0 : i32
    %c0_i32_0 = arith.constant 0 : i32
    %c0_i32_1 = arith.constant 0 : i32
    return %c0_i32, %c0_i32_0 : i32, i32
  }
  func.func @transform_1(%arg0: i32) -> (i32, i32) {
    %c0_i32 = arith.constant 0 : i32
    %c0_i32_0 = arith.constant 0 : i32
    return %arg0, %c0_i32 : i32, i32
  }
  func.func @transform_2(%arg0: i32) -> (i32, i32) {
    %c0_i32 = arith.constant 0 : i32
    %c0_i32_0 = arith.constant 0 : i32
    return %arg0, %c0_i32 : i32, i32
  }
}

module attributes {stable_mosaic.version = 11 : i64} {
  func.func @_rb_kernel(%arg0: i32, %arg1: memref<32x128xf32, #tpu.memory_space<vmem>>, %arg2: memref<128x128xf32, #tpu.memory_space<vmem>>, %arg3: memref<1x128xf32, #tpu.memory_space<vmem>>, %arg4: memref<128x128xf32, #tpu.memory_space<vmem>>, %arg5: memref<1x128xf32, #tpu.memory_space<vmem>>, %arg6: memref<32x128xf32, #tpu.memory_space<vmem>>) attributes {dimension_semantics = [#tpu.dimension_semantics<parallel>], iteration_bounds = array<i64: 1>, scalar_prefetch = 0 : i64, scratch_operands = 0 : i64, tpu.core_type = #tpu.core_type<tc>, window_params = [{transform_indices = @transform_0, window_bounds = array<i64: 32, 128>}, {pipeline_mode = #tpu.pipeline_mode<synchronous>, transform_indices = @transform_1, window_bounds = array<i64: 128, 128>}, {pipeline_mode = #tpu.pipeline_mode<synchronous>, transform_indices = @transform_2, window_bounds = array<i64: 1, 128>}, {pipeline_mode = #tpu.pipeline_mode<synchronous>, transform_indices = @transform_3, window_bounds = array<i64: 128, 128>}, {pipeline_mode = #tpu.pipeline_mode<synchronous>, transform_indices = @transform_4, window_bounds = array<i64: 1, 128>}, {transform_indices = @transform_5, window_bounds = array<i64: 32, 128>}]} {
    %c0 = arith.constant 0 : index
    %c0_0 = arith.constant 0 : index
    %0 = vector.load %arg1[%c0, %c0_0] : memref<32x128xf32, #tpu.memory_space<vmem>>, vector<32x128xf32>
    %c0_1 = arith.constant 0 : index
    %c0_2 = arith.constant 0 : index
    %1 = vector.load %arg2[%c0_1, %c0_2] : memref<128x128xf32, #tpu.memory_space<vmem>>, vector<128x128xf32>
    %cst = arith.constant dense<0.000000e+00> : vector<32x128xf32>
    %2 = tpu.matmul %0, %1, %cst {dimension_numbers = #tpu.dot_dimension_numbers<[1], [0], [0], [1], [0, 0, 1, 1], [], []>} : vector<32x128xf32>, vector<128x128xf32>, vector<32x128xf32> -> vector<32x128xf32>
    %c0_3 = arith.constant 0 : index
    %c0_4 = arith.constant 0 : index
    %3 = vector.load %arg3[%c0_3, %c0_4] : memref<1x128xf32, #tpu.memory_space<vmem>>, vector<1x128xf32>
    %4 = vector.broadcast %3 : vector<1x128xf32> to vector<32x128xf32>
    %5 = arith.addf %2, %4 : vector<32x128xf32>
    %cst_5 = arith.constant 5.000000e-02 : f32
    %6 = vector.broadcast %cst_5 : f32 to vector<32x128xf32>
    %7 = arith.mulf %6, %5 : vector<32x128xf32>
    %8 = arith.maximumf %5, %7 : vector<32x128xf32>
    %c0_6 = arith.constant 0 : index
    %c0_7 = arith.constant 0 : index
    %9 = vector.load %arg4[%c0_6, %c0_7] : memref<128x128xf32, #tpu.memory_space<vmem>>, vector<128x128xf32>
    %cst_8 = arith.constant dense<0.000000e+00> : vector<32x128xf32>
    %10 = tpu.matmul %8, %9, %cst_8 {dimension_numbers = #tpu.dot_dimension_numbers<[1], [0], [0], [1], [0, 0, 1, 1], [], []>} : vector<32x128xf32>, vector<128x128xf32>, vector<32x128xf32> -> vector<32x128xf32>
    %c0_9 = arith.constant 0 : index
    %c0_10 = arith.constant 0 : index
    %11 = vector.load %arg5[%c0_9, %c0_10] : memref<1x128xf32, #tpu.memory_space<vmem>>, vector<1x128xf32>
    %12 = vector.broadcast %11 : vector<1x128xf32> to vector<32x128xf32>
    %13 = arith.addf %10, %12 : vector<32x128xf32>
    %cst_11 = arith.constant 5.000000e-02 : f32
    %14 = vector.broadcast %cst_11 : f32 to vector<32x128xf32>
    %15 = arith.mulf %14, %13 : vector<32x128xf32>
    %16 = arith.maximumf %13, %15 : vector<32x128xf32>
    %17 = arith.addf %16, %0 : vector<32x128xf32>
    %c0_12 = arith.constant 0 : index
    %c0_13 = arith.constant 0 : index
    %18 = vector.load %arg6[%c0_12, %c0_13] : memref<32x128xf32, #tpu.memory_space<vmem>>, vector<32x128xf32>
    tpu.vector_store %arg6[%c0_12, %c0_13], %17 {strides = array<i32>} : memref<32x128xf32, #tpu.memory_space<vmem>>, vector<32x128xf32>,
    return
  }
  func.func @transform_0(%arg0: i32) -> (i32, i32) {
    %c0_i32 = arith.constant 0 : i32
    %c0_i32_0 = arith.constant 0 : i32
    return %arg0, %c0_i32 : i32, i32
  }
  func.func @transform_1(%arg0: i32) -> (i32, i32) {
    %c0_i32 = arith.constant 0 : i32
    %c0_i32_0 = arith.constant 0 : i32
    %c0_i32_1 = arith.constant 0 : i32
    return %c0_i32, %c0_i32_0 : i32, i32
  }
  func.func @transform_2(%arg0: i32) -> (i32, i32) {
    %c0_i32 = arith.constant 0 : i32
    %c0_i32_0 = arith.constant 0 : i32
    %c0_i32_1 = arith.constant 0 : i32
    return %c0_i32, %c0_i32_0 : i32, i32
  }
  func.func @transform_3(%arg0: i32) -> (i32, i32) {
    %c0_i32 = arith.constant 0 : i32
    %c0_i32_0 = arith.constant 0 : i32
    %c0_i32_1 = arith.constant 0 : i32
    return %c0_i32, %c0_i32_0 : i32, i32
  }
  func.func @transform_4(%arg0: i32) -> (i32, i32) {
    %c0_i32 = arith.constant 0 : i32
    %c0_i32_0 = arith.constant 0 : i32
    %c0_i32_1 = arith.constant 0 : i32
    return %c0_i32, %c0_i32_0 : i32, i32
  }
  func.func @transform_5(%arg0: i32) -> (i32, i32) {
    %c0_i32 = arith.constant 0 : i32
    %c0_i32_0 = arith.constant 0 : i32
    return %arg0, %c0_i32 : i32, i32
  }
}

</mosaic_0001>

<llo_original>
// kernel: tpu_custom_call.1
$region0: #{tpu_custom_call.1}
  #allocation0 [shape = 'u32[]', space=smem, size = 0x4, offset = 0x4, fixed_abs, tag = 'smem constant byte address 0x4 - core index']
  #allocation1 [shape = 'u32[144,128]{1,0:T(1,128)}', space=vmem, size = 0x12000, scoped, tag = 'internal scratch']
  %s0 = inlined_call_operand.hbm [shape: f32[8,128], index: 0, kind: input, shape index: {}]
  %s1 = inlined_call_operand.hbm [shape: f32[16,128], index: 1, kind: input, shape index: {}]
  %s2 = inlined_call_operand.hbm [shape: f32[16,128], index: 2, kind: output, shape index: {}]
  %s3 = sld [smem:[#allocation0]]
  $region49: #{tpu_custom_call.1} parent=0
    _
  %s5 = ssub.s32 1, %s3
  %s6 = scalar_select 0, %s5, %s3
  $region1: #{tpu_custom_call.1} parent=0
    #allocation2 [shape = 'u8[4096]{0}', space=vmem, size = 0x1000, scoped, tag = 'input window, operand 0, single buffered']
    #allocation3 [shape = 's32[2]{0}', space=sflag, size = 0x8, scoped, tag = 'scoped memory for tpu_custom_call.1']
    #allocation4 [shape = 's32[2]{0}', space=sflag, size = 0x8, scoped, tag = 'scoped memory for tpu_custom_call.1']
    #allocation5 [shape = 'u8[8192]{0}', space=vmem, size = 0x2000, scoped, tag = 'input window, operand 1']
    #allocation6 [shape = 's32[2]{0}', space=sflag, size = 0x8, scoped, tag = 'scoped memory for tpu_custom_call.1']
    #allocation7 [shape = 'u8[8192]{0}', space=vmem, size = 0x2000, scoped, tag = 'output window, operand 0']
    %7 = vsyncpa [#allocation3], 0
    %8 = vsyncpa [#allocation6], 0
    %s9 = scalar_lea.sflag [#allocation6], 1
    %10 = vsyncpa %s9, 0
    %11 = vsyncpa [#allocation4], 0
    %s12 = scalar_lea.sflag [#allocation4], 1
    %13 = vsyncpa %s12, 0
    loop: start=0, step=1, limit=4
    $region2: #{tpu_custom_call.1} parent=1 // loop_pre_header
      _
    $region3: #{tpu_custom_call.1} parent=1 // loop_header
      %s15 = sphi 0, %s19
      %p16 = scmp.ge.s32.totalorder %s15, 4
      %s23 = sphi 0, %s23
      %s25 = sphi 0, %s23
      %s26 = sphi 0, %s25
      %s40 = sphi 0, %s26
      %s46 = sphi 0, %s48
      %s49 = sphi 0, %s46
      %s50 = sphi 0, %s49
      %s66 = sphi 0, %s50
      %s72 = sphi 0, %s74
      %s75 = sphi 0, %s72
      %s76 = sphi 0, %s75
      %s92 = sphi 0, %s76
    $region4: #{tpu_custom_call.1} parent=1 // loop_header_branch
      %18 = sbr.rel (%p16) target = $region8
    $region5: #{tpu_custom_call.1} parent=1 // loop_body
      %s20 = ssub.s32 %s15, 1
      %s21 = ssub.s32 %s15, 2
      %s22 = sadd.s32 %s15, 1
      %s24 = sadd.s32 %s23, 1
      %p27 = scmp.eq.s32.totalorder %s15, 1
      %p28 = scmp.ne.s32.totalorder %s23, %s25
      %p29 = scmp.eq.s32.totalorder %s15, 0
      %p30 = por %p28, %p29
      %p31 = scmp.ne.s32.totalorder %s23, %s25
      %p32 = scmp.eq.s32.totalorder %s20, 1
      %p33 = por %p31, %p32
      %p34 = scmp.ne.s32.totalorder %s25, %s26
      %p35 = scmp.eq.s32.totalorder %s20, 0
      %p36 = por %p34, %p35
      %p37 = scmp.ne.s32.totalorder %s25, %s26
      %p38 = scmp.eq.s32.totalorder %s21, 1
      %p39 = por %p37, %p38
      %p41 = scmp.ne.s32.totalorder %s26, %s40
      %p42 = scmp.eq.s32.totalorder %s21, 0
      %p43 = por %p41, %p42
      %s44 = ssub.s32 %s15, %s22
      %p45 = scmp.eq.s32.totalorder %s44, 0
      %s47 = sadd.s32 %s46, 1
      %s48 = scalar_select %p45, %s46, %s47
      %p51 = pneg %p45
      %p52 = scmp.eq.s32.totalorder %s15, 1
      %p53 = por %p51, %p52
      %p54 = scmp.ne.s32.totalorder %s46, %s49
      %p55 = scmp.eq.s32.totalorder %s15, 0
      %p56 = por %p54, %p55
      %p57 = scmp.ne.s32.totalorder %s46, %s49
      %p58 = scmp.eq.s32.totalorder %s20, 1
      %p59 = por %p57, %p58
      %p60 = scmp.ne.s32.totalorder %s49, %s50
      %p61 = scmp.eq.s32.totalorder %s20, 0
      %p62 = por %p60, %p61
      %p63 = scmp.ne.s32.totalorder %s49, %s50
      %p64 = scmp.eq.s32.totalorder %s21, 1
      %p65 = por %p63, %p64
      %p67 = scmp.ne.s32.totalorder %s50, %s66
      %p68 = scmp.eq.s32.totalorder %s21, 0
      %p69 = por %p67, %p68
      %s70 = ssub.s32 %s15, %s22
      %p71 = scmp.eq.s32.totalorder %s70, 0
      %s73 = sadd.s32 %s72, 1
      %s74 = scalar_select %p71, %s72, %s73
      %p77 = pneg %p71
      %p78 = scmp.eq.s32.totalorder %s15, 1
      %p79 = por %p77, %p78
      %p80 = scmp.ne.s32.totalorder %s72, %s75
      %p81 = scmp.eq.s32.totalorder %s15, 0
      %p82 = por %p80, %p81
      %p83 = scmp.ne.s32.totalorder %s72, %s75
      %p84 = scmp.eq.s32.totalorder %s20, 1
      %p85 = por %p83, %p84
      %p86 = scmp.ne.s32.totalorder %s75, %s76
      %p87 = scmp.eq.s32.totalorder %s20, 0
      %p88 = por %p86, %p87
      %p89 = scmp.ne.s32.totalorder %s75, %s76
      %p90 = scmp.eq.s32.totalorder %s21, 1
      %p91 = por %p89, %p90
      %p93 = scmp.ne.s32.totalorder %s76, %s92
      %p94 = scmp.eq.s32.totalorder %s21, 0
      %p95 = por %p93, %p94
      %p96 = scmp.le.s32.totalorder 1, %s15
      %p97 = scmp.lt.s32.totalorder %s15, 3
      %p98 = pnand %p96, %p97
      %p99 = pneg %p98
      // Predicated region
      $region9: #{tpu_custom_call.1} parent=5 // pred_check
        _
      $region10: #{tpu_custom_call.1} parent=5 // pred_check_branch
        %101 = sbr.rel (%p98) target = $region12
      $region11: #{tpu_custom_call.1} parent=5 // pred_region
        %s102 = ssub.s32 %s15, 1
        // Predicated region
        $region13: #{tpu_custom_call.1} parent=11 // pred_check
          %p103 = pneg %p36
        $region14: #{tpu_custom_call.1} parent=11 // pred_check_branch
          %105 = sbr.rel (%p103) target = $region16
        $region15: #{tpu_custom_call.1} parent=11 // pred_region
          %s107 = ssub.s32 128, 128
          %108 = vsyncadd [#allocation3], %s107
          %s110 = sshll.u32 [#allocation2], 4
          %s111 = int_to_ptr.vmem [resolvable:$true] %s110
          %113 = dma.hbm_to_vmem [thread:$0]  %s0, 128, %s111, [#allocation3]
        $region16: #{tpu_custom_call.1} parent=11 // pred_fallthru
          _
      $region12: #{tpu_custom_call.1} parent=5 // pred_fallthru
        _
      %p114 = scmp.lt.s32.totalorder %s15, 2
      // Predicated region
      $region17: #{tpu_custom_call.1} parent=5 // pred_check
        %p115 = pneg %p114
      $region18: #{tpu_custom_call.1} parent=5 // pred_check_branch
        %117 = sbr.rel (%p115) target = $region20
      $region19: #{tpu_custom_call.1} parent=5 // pred_region
        // Predicated region
        $region21: #{tpu_custom_call.1} parent=19 // pred_check
          %p118 = pneg %p56
        $region22: #{tpu_custom_call.1} parent=19 // pred_check_branch
          %120 = sbr.rel (%p118) target = $region24
        $region23: #{tpu_custom_call.1} parent=19 // pred_region
          %s121 = sand.u32 %s46, 1
          %s122 = scalar_lea.sflag [#allocation6], %s121
          %s123 = sand.u32 %s46, 1
          %s124 = smul.addr %s123, 8
          %s125 = scalar_lea.vmem [#allocation5], %s124
          %s127 = ssub.s32 128, 128
          %128 = vsyncadd %s122, %s127
          %s129 = smul.addr %s15, 128
          %s130 = scalar_lea.hbm %s1, %s129
          %s132 = sshll.u32 %s125, 4
          %s133 = int_to_ptr.vmem [resolvable:$true] %s132
          %135 = dma.hbm_to_vmem [thread:$0]  %s130, 128, %s133, %s122
        $region24: #{tpu_custom_call.1} parent=19 // pred_fallthru
          _
      $region20: #{tpu_custom_call.1} parent=5 // pred_fallthru
        _
      %p136 = scmp.le.s32.totalorder 1, %s15
      %p137 = scmp.lt.s32.totalorder %s15, 3
      %p138 = pnand %p136, %p137
      %p139 = pneg %p138
      // Predicated region
      $region25: #{tpu_custom_call.1} parent=5 // pred_check
        _
      $region26: #{tpu_custom_call.1} parent=5 // pred_check_branch
        %141 = sbr.rel (%p138) target = $region28
      $region27: #{tpu_custom_call.1} parent=5 // pred_region
        %s142 = ssub.s32 %s15, 1
        // Predicated region
        $region29: #{tpu_custom_call.1} parent=27 // pred_check
          %p143 = pneg %p36
        $region30: #{tpu_custom_call.1} parent=27 // pred_check_branch
          %145 = sbr.rel (%p143) target = $region32
        $region31: #{tpu_custom_call.1} parent=27 // pred_region
          %146 = dma.done [#allocation3], 128
        $region32: #{tpu_custom_call.1} parent=27 // pred_fallthru
          _
        %s147 = sand.u32 %s49, 1
        %s148 = scalar_lea.sflag [#allocation6], %s147
        %s149 = sand.u32 %s49, 1
        %s150 = smul.addr %s149, 8
        %s151 = scalar_lea.vmem [#allocation5], %s150
        // Predicated region
        $region33: #{tpu_custom_call.1} parent=27 // pred_check
          %p152 = pneg %p62
        $region34: #{tpu_custom_call.1} parent=27 // pred_check_branch
          %154 = sbr.rel (%p152) target = $region36
        $region35: #{tpu_custom_call.1} parent=27 // pred_region
          %155 = dma.done %s148, 128
        $region36: #{tpu_custom_call.1} parent=27 // pred_fallthru
          _
        %p156 = pneg %p36
        %p157 = pneg %p33
        %s158 = sand.u32 %s49, 1
        %s159 = scalar_lea.sflag [#allocation6], %s158
        %s160 = sand.u32 %s49, 1
        %s161 = smul.addr %s160, 8
        %s162 = scalar_lea.vmem [#allocation5], %s161
        %p163 = pneg %p62
        %p164 = pneg %p59
        %p165 = pneg %p88
        %p166 = pneg %p85
        %s167 = sand.u32 %s75, 1
        %s168 = scalar_lea.sflag [#allocation4], %s167
        %s169 = sand.u32 %s75, 1
        %s170 = smul.addr %s169, 8
        %s171 = scalar_lea.vmem [#allocation7], %s170
        %v172 = vld [vmem:[%s151] sm:$0xff]
        %v173 = vld [vmem:[#allocation2] sm:$0xff]
        %v174 = vadd.f32 %v172, %v173
        %175 = vst [vmem:[%s171] sm:$0xff] %v174
        %s176 = sand.u32 %s75, 1
        %s177 = scalar_lea.sflag [#allocation4], %s176
        %s178 = sand.u32 %s75, 1
        %s179 = smul.addr %s178, 8
        %s180 = scalar_lea.vmem [#allocation7], %s179
        // Predicated region
        $region37: #{tpu_custom_call.1} parent=27 // pred_check
          %p181 = pneg %p85
        $region38: #{tpu_custom_call.1} parent=27 // pred_check_branch
          %183 = sbr.rel (%p181) target = $region40
        $region39: #{tpu_custom_call.1} parent=27 // pred_region
          %s185 = ssub.s32 128, 128
          %186 = vsyncadd %s177, %s185
          %s187 = smul.addr %s20, 128
          %s188 = scalar_lea.hbm %s2, %s187
          %s190 = sshll.u32 %s180, 4
          %s191 = int_to_ptr.vmem [resolvable:$true] %s190
          %193 = dma.vmem_to_hbm [thread:$0]  %s191, 128, %s188, %s177
        $region40: #{tpu_custom_call.1} parent=27 // pred_fallthru
          _
      $region28: #{tpu_custom_call.1} parent=5 // pred_fallthru
        _
      %p194 = scmp.le.s32.totalorder 2, %s15
      // Predicated region
      $region41: #{tpu_custom_call.1} parent=5 // pred_check
        %p195 = pneg %p194
      $region42: #{tpu_custom_call.1} parent=5 // pred_check_branch
        %197 = sbr.rel (%p195) target = $region44
      $region43: #{tpu_custom_call.1} parent=5 // pred_region
        %s198 = ssub.s32 %s15, 2
        // Predicated region
        $region45: #{tpu_custom_call.1} parent=43 // pred_check
          %p199 = pneg %p91
        $region46: #{tpu_custom_call.1} parent=43 // pred_check_branch
          %201 = sbr.rel (%p199) target = $region48
        $region47: #{tpu_custom_call.1} parent=43 // pred_region
          %s202 = sand.u32 %s76, 1
          %s203 = scalar_lea.sflag [#allocation4], %s202
          %s204 = sand.u32 %s76, 1
          %s205 = smul.addr %s204, 8
          %s206 = scalar_lea.vmem [#allocation7], %s205
          %207 = dma.done %s203, 128
        $region48: #{tpu_custom_call.1} parent=43 // pred_fallthru
          _
      $region44: #{tpu_custom_call.1} parent=5 // pred_fallthru
        _
    $region6: #{tpu_custom_call.1} parent=1 // loop_footer
      %s19 = sadd.s32 1, %s15
    $region7: #{tpu_custom_call.1} parent=1 // loop_footer_branch
      %14 = sbr.rel target = $region3
    $region8: #{tpu_custom_call.1} parent=1 // loop_exit
      _
    %208 = vsyncpa [#allocation3], 1
    %s209 = scalar_lea.sflag [#allocation3], 1
    %210 = vsyncpa %s209, 1
    %211 = vsyncpa [#allocation6], 1
    %s212 = scalar_lea.sflag [#allocation6], 1
    %213 = vsyncpa %s212, 1
    %214 = vsyncpa [#allocation4], 1
    %s215 = scalar_lea.sflag [#allocation4], 1
    %216 = vsyncpa %s215, 1

// kernel: tpu_custom_call.1
$region0: #{tpu_custom_call.1}
  #allocation0 [shape = 'u32[]', space=smem, size = 0x4, offset = 0x4, fixed_abs, tag = 'smem constant byte address 0x4 - core index']
  #allocation1 [shape = 'u32[144,128]{1,0:T(1,128)}', space=vmem, size = 0x12000, scoped, tag = 'internal scratch']
  %s0 = inlined_call_operand.hbm [shape: f32[32,128], index: 0, kind: input, shape index: {}]
  %s1 = inlined_call_operand.hbm [shape: f32[128,128], index: 1, kind: input, shape index: {}]
  %s2 = inlined_call_operand.vmem [shape: f32[1,128], index: 2, kind: input, shape index: {}]
  %s3 = inlined_call_operand.hbm [shape: f32[128,128], index: 3, kind: input, shape index: {}]
  %s4 = inlined_call_operand.vmem [shape: f32[1,128], index: 4, kind: input, shape index: {}]
  %s5 = inlined_call_operand.hbm [shape: f32[32,128], index: 5, kind: output, shape index: {}]
  %s6 = sld [smem:[#allocation0]]
  $region42: #{tpu_custom_call.1} parent=0
    _
  %s8 = ssub.s32 1, %s6
  %s9 = scalar_select 0, %s8, %s6
  $region1: #{tpu_custom_call.1} parent=0
    #allocation2 [shape = 'u8[16384]{0}', space=vmem, size = 0x4000, scoped, tag = 'input window, operand 0, single buffered']
    #allocation3 [shape = 's32[1]{0}', space=sflag, size = 0x4, scoped, tag = 'scoped memory for tpu_custom_call.1']
    #allocation4 [shape = 's32[1]{0}', space=sflag, size = 0x4, scoped, tag = 'scoped memory for tpu_custom_call.1']
    #allocation5 [shape = 'u8[65536]{0}', space=vmem, size = 0x10000, scoped, tag = 'input window, operand 1, single buffered']
    #allocation6 [shape = 's32[1]{0}', space=sflag, size = 0x4, scoped, tag = 'scoped memory for tpu_custom_call.1']
    #allocation7 [shape = 'u8[65536]{0}', space=vmem, size = 0x10000, scoped, tag = 'input window, operand 3, single buffered']
    #allocation8 [shape = 'u8[16384]{0}', space=vmem, size = 0x4000, scoped, tag = 'output window, operand 0, single buffered']
    %10 = vsyncpa [#allocation3], 0
    %11 = vsyncpa [#allocation6], 0
    %12 = vsyncpa [#allocation4], 0
    // Predicated region
    $region2: #{tpu_custom_call.1} parent=1 // pred_check
      _
    $region3: #{tpu_custom_call.1} parent=1 // pred_check_branch
      %14 = sbr.rel (0) target = $region5
    $region4: #{tpu_custom_call.1} parent=1 // pred_region
      %s16 = ssub.s32 512, 512
      %17 = vsyncadd [#allocation3], %s16
      %s18 = sshll.u32 [#allocation2], 4
      %s19 = int_to_ptr.vmem [resolvable:$true] %s18
      %24 = dma.hbm_to_vmem [thread:$0]  %s0, 512, %s19, [#allocation3], 128, 128, 8
    $region5: #{tpu_custom_call.1} parent=1 // pred_fallthru
      _
    // Predicated region
    $region6: #{tpu_custom_call.1} parent=1 // pred_check
      _
    $region7: #{tpu_custom_call.1} parent=1 // pred_check_branch
      %26 = sbr.rel (0) target = $region9
    $region8: #{tpu_custom_call.1} parent=1 // pred_region
      %s28 = ssub.s32 2048, 2048
      %29 = vsyncadd [#allocation6], %s28
      %s30 = sshll.u32 [#allocation5], 4
      %s31 = int_to_ptr.vmem [resolvable:$true] %s30
      %36 = dma.hbm_to_vmem [thread:$0]  %s1, 2048, %s31, [#allocation6], 128, 128, 8
    $region9: #{tpu_custom_call.1} parent=1 // pred_fallthru
      _
    // Predicated region
    $region10: #{tpu_custom_call.1} parent=1 // pred_check
      _
    $region11: #{tpu_custom_call.1} parent=1 // pred_check_branch
      %38 = sbr.rel (0) target = $region13
    $region12: #{tpu_custom_call.1} parent=1 // pred_region
      _
    $region13: #{tpu_custom_call.1} parent=1 // pred_fallthru
      _
    // Predicated region
    $region14: #{tpu_custom_call.1} parent=1 // pred_check
      _
    $region15: #{tpu_custom_call.1} parent=1 // pred_check_branch
      %40 = sbr.rel (0) target = $region17
    $region16: #{tpu_custom_call.1} parent=1 // pred_region
      %s42 = ssub.s32 2048, 2048
      %43 = vsyncadd [#allocation6], %s42
      %s44 = sshll.u32 [#allocation7], 4
      %s45 = int_to_ptr.vmem [resolvable:$true] %s44
      %50 = dma.hbm_to_vmem [thread:$0]  %s3, 2048, %s45, [#allocation6], 128, 128, 8
    $region17: #{tpu_custom_call.1} parent=1 // pred_fallthru
      _
    // Predicated region
    $region18: #{tpu_custom_call.1} parent=1 // pred_check
      _
    $region19: #{tpu_custom_call.1} parent=1 // pred_check_branch
      %52 = sbr.rel (0) target = $region21
    $region20: #{tpu_custom_call.1} parent=1 // pred_region
      _
    $region21: #{tpu_custom_call.1} parent=1 // pred_fallthru
      _
    // Predicated region
    $region22: #{tpu_custom_call.1} parent=1 // pred_check
      _
    $region23: #{tpu_custom_call.1} parent=1 // pred_check_branch
      %54 = sbr.rel (0) target = $region25
    $region24: #{tpu_custom_call.1} parent=1 // pred_region
      %55 = dma.done [#allocation3], 512
    $region25: #{tpu_custom_call.1} parent=1 // pred_fallthru
      _
    // Predicated region
    $region26: #{tpu_custom_call.1} parent=1 // pred_check
      _
    $region27: #{tpu_custom_call.1} parent=1 // pred_check_branch
      %57 = sbr.rel (0) target = $region29
    $region28: #{tpu_custom_call.1} parent=1 // pred_region
      %58 = dma.done [#allocation6], 2048
    $region29: #{tpu_custom_call.1} parent=1 // pred_fallthru
      _
    // Predicated region
    $region30: #{tpu_custom_call.1} parent=1 // pred_check
      _
    $region31: #{tpu_custom_call.1} parent=1 // pred_check_branch
      %60 = sbr.rel (0) target = $region33
    $region32: #{tpu_custom_call.1} parent=1 // pred_region
      %61 = dma.done [#allocation6], 2048
    $region33: #{tpu_custom_call.1} parent=1 // pred_fallthru
      _
    %v62 = vld [vmem:[#allocation2] sm:$0xff]
    %v63 = vld [vmem:[#allocation2 + $0x8] sm:$0xff]
    %v64 = vld [vmem:[#allocation2 + $0x10] sm:$0xff]
    %v65 = vld [vmem:[#allocation2 + $0x18] sm:$0xff]
    %v66 = vld [vmem:[#allocation5] sm:$0xff]
    %v67 = vld [vmem:[#allocation5 + $0x8] sm:$0xff]
    %v68 = vld [vmem:[#allocation5 + $0x10] sm:$0xff]
    %v69 = vld [vmem:[#allocation5 + $0x18] sm:$0xff]
    %v70 = vld [vmem:[#allocation5 + $0x20] sm:$0xff]
    %v71 = vld [vmem:[#allocation5 + $0x28] sm:$0xff]
    %v72 = vld [vmem:[#allocation5 + $0x30] sm:$0xff]
    %v73 = vld [vmem:[#allocation5 + $0x38] sm:$0xff]
    %v74 = vld [vmem:[#allocation5 + $0x40] sm:$0xff]
    %v75 = vld [vmem:[#allocation5 + $0x48] sm:$0xff]
    %v76 = vld [vmem:[#allocation5 + $0x50] sm:$0xff]
    %v77 = vld [vmem:[#allocation5 + $0x58] sm:$0xff]
    %v78 = vld [vmem:[#allocation5 + $0x60] sm:$0xff]
    %v79 = vld [vmem:[#allocation5 + $0x68] sm:$0xff]
    %v80 = vld [vmem:[#allocation5 + $0x70] sm:$0xff]
    %v81 = vld [vmem:[#allocation5 + $0x78] sm:$0xff]
    %v82 = vld [vmem:[%s2] sm:$0x1]
    %v84 = vlaneseq
    %v85 = vshrl.u32 %v84, 7
    %v86 = vsub.s32 0, %v85
    %v87 = vrot.slane %v82, %v86
    %89 = vmatprep.subr.mxu0 0.0
    %90 = vmatpush1.msra.mxu0 %v81
    %91 = vmatprep.subr.mxu0 0.0
    %92 = vmatpush1.msra.mxu0 %v80
    %93 = vmatprep.subr.mxu0 0.0
    %94 = vmatpush1.msra.mxu0 %v79
    %95 = vmatprep.subr.mxu0 0.0
    %96 = vmatpush1.msra.mxu0 %v78
    %97 = vmatprep.subr.mxu0 0.0
    %98 = vmatpush1.msra.mxu0 %v77
    %99 = vmatprep.subr.mxu0 0.0
    %100 = vmatpush1.msra.mxu0 %v76
    %101 = vmatprep.subr.mxu0 0.0
    %102 = vmatpush1.msra.mxu0 %v75
    %103 = vmatprep.subr.mxu0 0.0
    %104 = vmatpush1.msra.mxu0 %v74
    %105 = vmatprep.subr.mxu0 0.0
    %106 = vmatpush1.msra.mxu0 %v73
    %107 = vmatprep.subr.mxu0 0.0
    %108 = vmatpush1.msra.mxu0 %v72
    %109 = vmatprep.subr.mxu0 0.0
    %110 = vmatpush1.msra.mxu0 %v71
    %111 = vmatprep.subr.mxu0 0.0
    %112 = vmatpush1.msra.mxu0 %v70
    %113 = vmatprep.subr.mxu0 0.0
    %114 = vmatpush1.msra.mxu0 %v69
    %115 = vmatprep.subr.mxu0 0.0
    %116 = vmatpush1.msra.mxu0 %v68
    %117 = vmatprep.subr.mxu0 0.0
    %118 = vmatpush1.msra.mxu0 %v67
    %119 = vmatprep.subr.mxu0 0.0
    %120 = vmatpush1.msra.mxu0 %v66
    %121 = vmatprep.subr.mxu0 0.0
    %122 = vmatpush2.msra.mxu0 0.0
    %123 = vmatprep.subr.mxu0 0.0
    %124 = vmatpush2.msra.mxu0 0.0
    %125 = vmatprep.subr.mxu0 0.0
    %126 = vmatpush2.msra.mxu0 0.0
    %127 = vmatprep.subr.mxu0 0.0
    %128 = vmatpush2.msra.mxu0 0.0
    %129 = vmatprep.subr.mxu0 0.0
    %130 = vmatpush2.msra.mxu0 0.0
    %131 = vmatprep.subr.mxu0 0.0
    %132 = vmatpush2.msra.mxu0 0.0
    %133 = vmatprep.subr.mxu0 0.0
    %134 = vmatpush2.msra.mxu0 0.0
    %135 = vmatprep.subr.mxu0 0.0
    %136 = vmatpush2.msra.mxu0 0.0
    %137 = vmatprep.subr.mxu0 0.0
    %138 = vmatpush2.msra.mxu0 0.0
    %139 = vmatprep.subr.mxu0 0.0
    %140 = vmatpush2.msra.mxu0 0.0
    %141 = vmatprep.subr.mxu0 0.0
    %142 = vmatpush2.msra.mxu0 0.0
    %143 = vmatprep.subr.mxu0 0.0
    %144 = vmatpush2.msra.mxu0 0.0
    %145 = vmatprep.subr.mxu0 0.0
    %146 = vmatpush2.msra.mxu0 0.0
    %147 = vmatprep.subr.mxu0 0.0
    %148 = vmatpush2.msra.mxu0 0.0
    %149 = vmatprep.subr.mxu0 0.0
    %150 = vmatpush2.msra.mxu0 0.0
    %151 = vmatprep.subr.mxu0 0.0
    %152 = vmatpush2.msra.mxu0 0.0
    %153 = vmatprep.mubr.f32.mxu0 0.0
    %154 = vmatmul.mubr.f32.gmra.mxu0 %v62
    %v155 = vpop.f32.mrf.mxu0
    %v156 = vadd.f32 %v87, %v155
    %v157 = vpop.f32.mrf.mxu0
    %158 = vmatprep.mubr.f32.mxu0 0.0
    %159 = vmatmul.mubr.f32.gmra.mxu0 %v63
    %v160 = vpop.f32.mrf.mxu0
    %v161 = vadd.f32 %v87, %v160
    %v162 = vpop.f32.mrf.mxu0
    %163 = vmatprep.mubr.f32.mxu0 0.0
    %164 = vmatmul.mubr.f32.gmra.mxu0 %v64
    %v165 = vpop.f32.mrf.mxu0
    %v166 = vadd.f32 %v87, %v165
    %v167 = vpop.f32.mrf.mxu0
    %168 = vmatprep.mubr.f32.mxu0 0.0
    %169 = vmatmul.mubr.f32.gmra.mxu0 %v65
    %v170 = vpop.f32.mrf.mxu0
    %v171 = vadd.f32 %v87, %v170
    %v172 = vpop.f32.mrf.mxu0
    %173 = vdwg.mxu0
    %v174 = vmul.f32 %v156, 0.05
    %v175 = vmul.f32 %v161, 0.05
    %v176 = vmul.f32 %v166, 0.05
    %v177 = vmul.f32 %v171, 0.05
    %v178 = vmax.f32 %v156, %v174
    %v179 = vmax.f32 %v161, %v175
    %v180 = vmax.f32 %v166, %v176
    %v181 = vmax.f32 %v171, %v177
    %v182 = vld [vmem:[#allocation7] sm:$0xff]
    %v183 = vld [vmem:[#allocation7 + $0x8] sm:$0xff]
    %v184 = vld [vmem:[#allocation7 + $0x10] sm:$0xff]
    %v185 = vld [vmem:[#allocation7 + $0x18] sm:$0xff]
    %v186 = vld [vmem:[#allocation7 + $0x20] sm:$0xff]
    %v187 = vld [vmem:[#allocation7 + $0x28] sm:$0xff]
    %v188 = vld [vmem:[#allocation7 + $0x30] sm:$0xff]
    %v189 = vld [vmem:[#allocation7 + $0x38] sm:$0xff]
    %v190 = vld [vmem:[#allocation7 + $0x40] sm:$0xff]
    %v191 = vld [vmem:[#allocation7 + $0x48] sm:$0xff]
    %v192 = vld [vmem:[#allocation7 + $0x50] sm:$0xff]
    %v193 = vld [vmem:[#allocation7 + $0x58] sm:$0xff]
    %v194 = vld [vmem:[#allocation7 + $0x60] sm:$0xff]
    %v195 = vld [vmem:[#allocation7 + $0x68] sm:$0xff]
    %v196 = vld [vmem:[#allocation7 + $0x70] sm:$0xff]
    %v197 = vld [vmem:[#allocation7 + $0x78] sm:$0xff]
    %v198 = vld [vmem:[%s4] sm:$0x1]
    %v200 = vlaneseq
    %v201 = vshrl.u32 %v200, 7
    %v202 = vsub.s32 0, %v201
    %v203 = vrot.slane %v198, %v202
    %205 = vmatprep.subr.mxu0 0.0
    %206 = vmatpush1.msra.mxu0 %v197
    %207 = vmatprep.subr.mxu0 0.0
    %208 = vmatpush1.msra.mxu0 %v196
    %209 = vmatprep.subr.mxu0 0.0
    %210 = vmatpush1.msra.mxu0 %v195
    %211 = vmatprep.subr.mxu0 0.0
    %212 = vmatpush1.msra.mxu0 %v194
    %213 = vmatprep.subr.mxu0 0.0
    %214 = vmatpush1.msra.mxu0 %v193
    %215 = vmatprep.subr.mxu0 0.0
    %216 = vmatpush1.msra.mxu0 %v192
    %217 = vmatprep.subr.mxu0 0.0
    %218 = vmatpush1.msra.mxu0 %v191
    %219 = vmatprep.subr.mxu0 0.0
    %220 = vmatpush1.msra.mxu0 %v190
    %221 = vmatprep.subr.mxu0 0.0
    %222 = vmatpush1.msra.mxu0 %v189
    %223 = vmatprep.subr.mxu0 0.0
    %224 = vmatpush1.msra.mxu0 %v188
    %225 = vmatprep.subr.mxu0 0.0
    %226 = vmatpush1.msra.mxu0 %v187
    %227 = vmatprep.subr.mxu0 0.0
    %228 = vmatpush1.msra.mxu0 %v186
    %229 = vmatprep.subr.mxu0 0.0
    %230 = vmatpush1.msra.mxu0 %v185
    %231 = vmatprep.subr.mxu0 0.0
    %232 = vmatpush1.msra.mxu0 %v184
    %233 = vmatprep.subr.mxu0 0.0
    %234 = vmatpush1.msra.mxu0 %v183
    %235 = vmatprep.subr.mxu0 0.0
    %236 = vmatpush1.msra.mxu0 %v182
    %237 = vmatprep.subr.mxu0 0.0
    %238 = vmatpush2.msra.mxu0 0.0
    %239 = vmatprep.subr.mxu0 0.0
    %240 = vmatpush2.msra.mxu0 0.0
    %241 = vmatprep.subr.mxu0 0.0
    %242 = vmatpush2.msra.mxu0 0.0
    %243 = vmatprep.subr.mxu0 0.0
    %244 = vmatpush2.msra.mxu0 0.0
    %245 = vmatprep.subr.mxu0 0.0
    %246 = vmatpush2.msra.mxu0 0.0
    %247 = vmatprep.subr.mxu0 0.0
    %248 = vmatpush2.msra.mxu0 0.0
    %249 = vmatprep.subr.mxu0 0.0
    %250 = vmatpush2.msra.mxu0 0.0
    %251 = vmatprep.subr.mxu0 0.0
    %252 = vmatpush2.msra.mxu0 0.0
    %253 = vmatprep.subr.mxu0 0.0
    %254 = vmatpush2.msra.mxu0 0.0
    %255 = vmatprep.subr.mxu0 0.0
    %256 = vmatpush2.msra.mxu0 0.0
    %257 = vmatprep.subr.mxu0 0.0
    %258 = vmatpush2.msra.mxu0 0.0
    %259 = vmatprep.subr.mxu0 0.0
    %260 = vmatpush2.msra.mxu0 0.0
    %261 = vmatprep.subr.mxu0 0.0
    %262 = vmatpush2.msra.mxu0 0.0
    %263 = vmatprep.subr.mxu0 0.0
    %264 = vmatpush2.msra.mxu0 0.0
    %265 = vmatprep.subr.mxu0 0.0
    %266 = vmatpush2.msra.mxu0 0.0
    %267 = vmatprep.subr.mxu0 0.0
    %268 = vmatpush2.msra.mxu0 0.0
    %269 = vmatprep.mubr.f32.mxu0 0.0
    %270 = vmatmul.mubr.f32.gmra.mxu0 %v178
    %v271 = vpop.f32.mrf.mxu0
    %v272 = vadd.f32 %v203, %v271
    %v273 = vpop.f32.mrf.mxu0
    %274 = vmatprep.mubr.f32.mxu0 0.0
    %275 = vmatmul.mubr.f32.gmra.mxu0 %v179
    %v276 = vpop.f32.mrf.mxu0
    %v277 = vadd.f32 %v203, %v276
    %v278 = vpop.f32.mrf.mxu0
    %279 = vmatprep.mubr.f32.mxu0 0.0
    %280 = vmatmul.mubr.f32.gmra.mxu0 %v180
    %v281 = vpop.f32.mrf.mxu0
    %v282 = vadd.f32 %v203, %v281
    %v283 = vpop.f32.mrf.mxu0
    %284 = vmatprep.mubr.f32.mxu0 0.0
    %285 = vmatmul.mubr.f32.gmra.mxu0 %v181
    %v286 = vpop.f32.mrf.mxu0
    %v287 = vadd.f32 %v203, %v286
    %v288 = vpop.f32.mrf.mxu0
    %289 = vdwg.mxu0
    %v290 = vmul.f32 %v272, 0.05
    %v291 = vmul.f32 %v277, 0.05
    %v292 = vmul.f32 %v282, 0.05
    %v293 = vmul.f32 %v287, 0.05
    %v294 = vmax.f32 %v272, %v290
    %v295 = vmax.f32 %v277, %v291
    %v296 = vmax.f32 %v282, %v292
    %v297 = vmax.f32 %v287, %v293
    %v298 = vadd.f32 %v294, %v62
    %v299 = vadd.f32 %v295, %v63
    %v300 = vadd.f32 %v296, %v64
    %v301 = vadd.f32 %v297, %v65
    %302 = vst [vmem:[#allocation8] sm:$0xff] %v298
    %303 = vst [vmem:[#allocation8 + $0x8] sm:$0xff] %v299
    %304 = vst [vmem:[#allocation8 + $0x10] sm:$0xff] %v300
    %305 = vst [vmem:[#allocation8 + $0x18] sm:$0xff] %v301
    // Predicated region
    $region34: #{tpu_custom_call.1} parent=1 // pred_check
      _
    $region35: #{tpu_custom_call.1} parent=1 // pred_check_branch
      %307 = sbr.rel (0) target = $region37
    $region36: #{tpu_custom_call.1} parent=1 // pred_region
      %s309 = ssub.s32 512, 512
      %310 = vsyncadd [#allocation4], %s309
      %s311 = sshll.u32 [#allocation8], 4
      %s312 = int_to_ptr.vmem [resolvable:$true] %s311
      %317 = dma.vmem_to_hbm [thread:$0]  %s312, 512, %s5, [#allocation4], 128, 128, 8
    $region37: #{tpu_custom_call.1} parent=1 // pred_fallthru
      _
    // Predicated region
    $region38: #{tpu_custom_call.1} parent=1 // pred_check
      _
    $region39: #{tpu_custom_call.1} parent=1 // pred_check_branch
      %319 = sbr.rel (0) target = $region41
    $region40: #{tpu_custom_call.1} parent=1 // pred_region
      %320 = dma.done [#allocation4], 512
    $region41: #{tpu_custom_call.1} parent=1 // pred_fallthru
      _
    %321 = vsyncpa [#allocation3], 1
    %322 = vsyncpa [#allocation6], 1
    %323 = vsyncpa [#allocation4], 1

</llo_original>
